<compile_context>
chip_gen: v7x
topology: tpu7x:2x2x1
jax: 0.10.0
libtpu: 0.0.40
codegen_flags: <defaults>
</compile_context>

<pallas_src>
import jax
import jax.numpy as jnp
from jax import lax
from jax.experimental import pallas as pl
from jax.experimental.pallas import tpu as pltpu


def _round_up(x: int, m: int) -> int:
    return ((x + m - 1) // m) * m


def _vmem_limit_bytes() -> int:
    """Generation-aware scoped-VMEM budget with a conservative fallback."""
    cap = None
    try:
        cap = int(getattr(pltpu.get_tpu_info(), "vmem_capacity_bytes", 0)) or None
    except Exception:
        cap = None
    if cap is None:
        cap = 64 * 1024 * 1024  # v7x per-TC physical VMEM (safe everywhere)
    return min((cap * 3) // 4, 100 * 1024 * 1024)


# ---------------------------------------------------------------------------
# Kernels
# ---------------------------------------------------------------------------

def _linear_relu_block_kernel(x_ref, w_ref, b_ref, o_ref):
    """One tile (or whole array): o = relu(x @ W^T + b). No accumulator."""
    y = lax.dot_general(
        x_ref[...], w_ref[...],
        dimension_numbers=(((1,), (1,)), ((), ())),   # contract K of x with K of W
        preferred_element_type=jnp.float32,
    )
    o_ref[...] = jnp.maximum(y + b_ref[...], 0.0).astype(o_ref.dtype)


def _linear_relu_multi_k_kernel(x_ref, w_ref, b_ref, o_ref, acc_ref):
    """K-tiled path: f32 accumulator resident across the K grid axis."""
    k = pl.program_id(2)

    @pl.when(k == 0)
    def _init():
        acc_ref[...] = jnp.zeros_like(acc_ref)

    acc_ref[...] += lax.dot_general(
        x_ref[...], w_ref[...],
        dimension_numbers=(((1,), (1,)), ((), ())),
        preferred_element_type=jnp.float32,
    )

    @pl.when(k == pl.num_programs(2) - 1)
    def _finalize():
        o_ref[...] = jnp.maximum(acc_ref[...] + b_ref[...], 0.0).astype(o_ref.dtype)


# ---------------------------------------------------------------------------
# Wrapper
# ---------------------------------------------------------------------------

_SMALL_PATH_BYTES = 8 * 1024 * 1024  # everything fits comfortably as one block


def first_net_forward(x, weight, bias, *, tm=512, tn=512, tk=1024,
                      compute_dtype=None, force_tiled=False):
    """FirstNet forward: relu(x @ weight.T + bias).

    x:      (B, input_dim)
    weight: (hidden_dim, input_dim)   (PyTorch nn.Linear layout)
    bias:   (hidden_dim,)
    returns (B, hidden_dim) in x's original dtype.
    """
    B, K = x.shape
    H, Kw = weight.shape
    assert Kw == K, "weight/input dim mismatch"
    out_dtype = x.dtype

    if compute_dtype is not None:       # e.g. jnp.bfloat16 for HBM/MXU savings
        x = x.astype(compute_dtype)
        weight = weight.astype(compute_dtype)

    b2 = bias.astype(jnp.float32).reshape(1, H)
    elt = jnp.dtype(x.dtype).itemsize
    total_bytes = elt * (B * K + H * K) + 4 * (B * H + H)
    vmem_limit = _vmem_limit_bytes()

    # ---- Small fast path: whole problem as one VMEM block, no grid ----------
    if not force_tiled and total_bytes <= _SMALL_PATH_BYTES:
        return pl.pallas_call(
            _linear_relu_block_kernel,
            out_shape=jax.ShapeDtypeStruct((B, H), out_dtype),
            compiler_params=pltpu.CompilerParams(vmem_limit_bytes=vmem_limit),
        )(x, weight, b2)

    # ---- Tiled path ---------------------------------------------------------
    # Shrink tiles for small dims while keeping (8, 128) block alignment.
    tm = min(tm, _round_up(B, 8))
    tn = min(tn, _round_up(H, 128))

    # Balance K-steps vs zero-padding waste; only K needs padding for
    # correctness (zero columns contribute nothing to the reduction).
    num_k = pl.cdiv(K, tk)
    tk = _round_up(pl.cdiv(K, num_k), 128)
    Kp = num_k * tk
    if Kp != K:
        x = jnp.pad(x, ((0, 0), (0, Kp - K)))
        weight = jnp.pad(weight, ((0, 0), (0, Kp - K)))

    grid_m = pl.cdiv(B, tm)
    grid_n = pl.cdiv(H, tn)

    if num_k == 1:
        # Single K step: no accumulator scratch, no pl.when regions.
        return pl.pallas_call(
            _linear_relu_block_kernel,
            out_shape=jax.ShapeDtypeStruct((B, H), out_dtype),
            grid=(grid_m, grid_n),
            in_specs=[
                pl.BlockSpec((tm, tk), lambda i, j: (i, 0)),   # x tile
                pl.BlockSpec((tn, tk), lambda i, j: (j, 0)),   # W tile (out, in)
                pl.BlockSpec((1, tn), lambda i, j: (0, j)),    # bias tile
            ],
            out_specs=pl.BlockSpec((tm, tn), lambda i, j: (i, j)),
            compiler_params=pltpu.CompilerParams(
                dimension_semantics=("parallel", "parallel"),
                vmem_limit_bytes=vmem_limit,
            ),
        )(x, weight, b2)

    return pl.pallas_call(
        _linear_relu_multi_k_kernel,
        out_shape=jax.ShapeDtypeStruct((B, H), out_dtype),
        grid=(grid_m, grid_n, num_k),
        in_specs=[
            pl.BlockSpec((tm, tk), lambda i, j, k: (i, k)),    # x tile
            pl.BlockSpec((tn, tk), lambda i, j, k: (j, k)),    # W tile (out, in)
            pl.BlockSpec((1, tn), lambda i, j, k: (0, j)),     # bias tile
        ],
        out_specs=pl.BlockSpec((tm, tn), lambda i, j, k: (i, j)),
        scratch_shapes=[pltpu.VMEM((tm, tn), jnp.float32)],
        compiler_params=pltpu.CompilerParams(
            dimension_semantics=("parallel", "parallel", "arbitrary"),
            vmem_limit_bytes=vmem_limit,
        ),
    )(x, weight, b2)


# ---------------------------------------------------------------------------
# Self-test
# ---------------------------------------------------------------------------

def _reference(x, weight, bias):
    y = jnp.dot(x, weight.T, precision=lax.Precision.HIGHEST,
                preferred_element_type=jnp.float32) + bias
    return jnp.maximum(y, 0.0)


def _make_inputs(key, B, K, H):
    kx, kw, kb = jax.random.split(key, 3)
    x = jax.random.normal(kx, (B, K), dtype=jnp.float32)
    weight = jax.random.normal(kw, (H, K), dtype=jnp.float32) * 0.1
    bias = jax.random.normal(kb, (H,), dtype=jnp.float32) * 0.1
    return x, weight, bias


if __name__ == "__main__":
    key = jax.random.PRNGKey(0)
    k0, k1, k2 = jax.random.split(key, 3)

    # 1) The shipped FirstNet config (small fast path): batch=8, in=16, hidden=32.
    B, input_dim, hidden_dim = 8, 16, 32
    x, w, b = _make_inputs(k0, B, input_dim, hidden_dim)
    out = jax.block_until_ready(first_net_forward(x, w, b))
    ref = _reference(x, w, b)
    assert out.shape == (B, hidden_dim)
    assert jnp.allclose(out, ref, atol=1e-5, rtol=1e-5), "small-path mismatch"

    # 2) Tiled single-K path with non-aligned M/N (exercises masked edge blocks).
    x, w, b = _make_inputs(k1, 200, 300, 260)
    out = jax.block_until_ready(first_net_forward(x, w, b, force_tiled=True))
    ref = _reference(x, w, b)
    assert out.shape == (200, 260)
    assert jnp.allclose(out, ref, atol=1e-4, rtol=1e-4), "single-K tiled mismatch"

    # 3) Tiled multi-K path (accumulator across K grid axis, K zero-padded).
    x, w, b = _make_inputs(k2, 128, 2500, 256)
    out = jax.block_until_ready(first_net_forward(x, w, b, force_tiled=True))
    ref = _reference(x, w, b)
    assert out.shape == (128, 256)
    assert jnp.allclose(out, ref, atol=1e-3, rtol=1e-3), "multi-K tiled mismatch"

    print("KERNEL_OK")
</pallas_src>

<mosaic_0001>
module attributes {stable_mosaic.version = 11 : i64} {
  func.func @_linear_relu_block_kernel(%arg0: memref<8x16xf32, #tpu.memory_space<vmem>>, %arg1: memref<32x16xf32, #tpu.memory_space<vmem>>, %arg2: memref<1x32xf32, #tpu.memory_space<vmem>>, %arg3: memref<8x32xf32, #tpu.memory_space<vmem>>) attributes {dimension_semantics = [], scalar_prefetch = 0 : i64, scratch_operands = 0 : i64, tpu.core_type = #tpu.core_type<tc>} {
    %c0 = arith.constant 0 : index
    %c0_0 = arith.constant 0 : index
    %0 = vector.load %arg0[%c0, %c0_0] : memref<8x16xf32, #tpu.memory_space<vmem>>, vector<8x16xf32>
    %c0_1 = arith.constant 0 : index
    %c0_2 = arith.constant 0 : index
    %1 = vector.load %arg1[%c0_1, %c0_2] : memref<32x16xf32, #tpu.memory_space<vmem>>, vector<32x16xf32>
    %cst = arith.constant dense<0.000000e+00> : vector<8x32xf32>
    %2 = tpu.matmul %0, %1, %cst {dimension_numbers = #tpu.dot_dimension_numbers<[1], [1], [0], [0], [0, 0, 1, 0], [], []>} : vector<8x16xf32>, vector<32x16xf32>, vector<8x32xf32> -> vector<8x32xf32>
    %c0_3 = arith.constant 0 : index
    %c0_4 = arith.constant 0 : index
    %3 = vector.load %arg2[%c0_3, %c0_4] : memref<1x32xf32, #tpu.memory_space<vmem>>, vector<1x32xf32>
    %4 = vector.broadcast %3 : vector<1x32xf32> to vector<8x32xf32>
    %5 = arith.addf %2, %4 : vector<8x32xf32>
    %cst_5 = arith.constant 0.000000e+00 : f32
    %6 = vector.broadcast %cst_5 : f32 to vector<8x32xf32>
    %7 = arith.maximumf %5, %6 : vector<8x32xf32>
    %c0_6 = arith.constant 0 : index
    %c0_7 = arith.constant 0 : index
    %8 = vector.load %arg3[%c0_6, %c0_7] : memref<8x32xf32, #tpu.memory_space<vmem>>, vector<8x32xf32>
    tpu.vector_store %arg3[%c0_6, %c0_7], %7 {strides = array<i32>} : memref<8x32xf32, #tpu.memory_space<vmem>>, vector<8x32xf32>,
    return
  }
}

</mosaic_0001>

<llo_original>
// kernel: tpu_custom_call.1
$region0: #{tpu_custom_call.1}
  #allocation0 [shape = 'u32[]', space=smem, size = 0x4, offset = 0x4, fixed_abs, tag = 'smem constant byte address 0x4 - core index']
  #allocation1 [shape = 'u32[144,128]{1,0:T(1,128)}', space=vmem, size = 0x12000, scoped, tag = 'internal scratch']
  %s0 = inlined_call_operand.vmem [shape: f32[8,16], index: 0, kind: input, shape index: {}]
  %s1 = inlined_call_operand.vmem [shape: f32[32,16], index: 1, kind: input, shape index: {}]
  %s2 = inlined_call_operand.vmem [shape: f32[1,32], index: 2, kind: input, shape index: {}]
  %s3 = inlined_call_operand.hbm [shape: f32[8,32], index: 3, kind: output, shape index: {}]
  %s4 = sld [smem:[#allocation0]]
  $region22: #{tpu_custom_call.1} parent=0
    _
  %s6 = ssub.s32 1, %s4
  %s7 = scalar_select 0, %s6, %s4
  $region1: #{tpu_custom_call.1} parent=0
    #allocation2 [shape = 'u8[4096]{0}', space=vmem, size = 0x1000, scoped, tag = 'output window, operand 0, single buffered']
    #allocation3 [shape = 's32[1]{0}', space=sflag, size = 0x4, scoped, tag = 'scoped memory for tpu_custom_call.1']
    %8 = vsyncpa [#allocation3], 0
    // Predicated region
    $region2: #{tpu_custom_call.1} parent=1 // pred_check
      _
    $region3: #{tpu_custom_call.1} parent=1 // pred_check_branch
      %10 = sbr.rel (0) target = $region5
    $region4: #{tpu_custom_call.1} parent=1 // pred_region
      _
    $region5: #{tpu_custom_call.1} parent=1 // pred_fallthru
      _
    // Predicated region
    $region6: #{tpu_custom_call.1} parent=1 // pred_check
      _
    $region7: #{tpu_custom_call.1} parent=1 // pred_check_branch
      %12 = sbr.rel (0) target = $region9
    $region8: #{tpu_custom_call.1} parent=1 // pred_region
      _
    $region9: #{tpu_custom_call.1} parent=1 // pred_fallthru
      _
    // Predicated region
    $region10: #{tpu_custom_call.1} parent=1 // pred_check
      _
    $region11: #{tpu_custom_call.1} parent=1 // pred_check_branch
      %14 = sbr.rel (0) target = $region13
    $region12: #{tpu_custom_call.1} parent=1 // pred_region
      _
    $region13: #{tpu_custom_call.1} parent=1 // pred_fallthru
      _
    %v15 = vld [vmem:[%s0] sm:$0xff]
    %v16 = vld [vmem:[%s1] sm:$0xff]
    %v17 = vld [vmem:[%s1 + $0x8] sm:$0xff]
    %v18 = vld [vmem:[%s1 + $0x10] sm:$0xff]
    %v19 = vld [vmem:[%s1 + $0x18] sm:$0xff]
    %v20 = vld [vmem:[%s2] sm:$0x1]
    %v22 = vlaneseq
    %v23 = vshrl.u32 %v22, 7
    %v24 = vsub.s32 0, %v23
    %v25 = vrot.slane %v20, %v24
    %vm27 = vcmask 130048
    %v29 = vsel %vm27, %v15, 0
    %v32 = vsel %vm27, %v16, 0
    %v35 = vsel %vm27, %v17, 0
    %v38 = vsel %vm27, %v18, 0
    %v41 = vsel %vm27, %v19, 0
    %43 = vmatprep.subr.mxu0 0.0
    %44 = vmatpush1.xpose.msra.mxu0 %v32
    %45 = vmatprep.subr.mxu0 0.0
    %46 = vmatpush1.xpose.msra.mxu0 %v35
    %47 = vmatprep.subr.mxu0 0.0
    %48 = vmatpush1.xpose.msra.mxu0 %v38
    %49 = vmatprep.subr.mxu0 0.0
    %50 = vmatpush1.xpose.msra.mxu0 %v41
    %51 = vmatprep.subr.mxu0 0.0
    %52 = vmatpush1.xpose.msra.mxu0 0.0
    %53 = vmatprep.subr.mxu0 0.0
    %54 = vmatpush1.xpose.msra.mxu0 0.0
    %55 = vmatprep.subr.mxu0 0.0
    %56 = vmatpush1.xpose.msra.mxu0 0.0
    %57 = vmatprep.subr.mxu0 0.0
    %58 = vmatpush1.xpose.msra.mxu0 0.0
    %59 = vmatprep.subr.mxu0 0.0
    %60 = vmatpush1.xpose.msra.mxu0 0.0
    %61 = vmatprep.subr.mxu0 0.0
    %62 = vmatpush1.xpose.msra.mxu0 0.0
    %63 = vmatprep.subr.mxu0 0.0
    %64 = vmatpush1.xpose.msra.mxu0 0.0
    %65 = vmatprep.subr.mxu0 0.0
    %66 = vmatpush1.xpose.msra.mxu0 0.0
    %67 = vmatprep.subr.mxu0 0.0
    %68 = vmatpush1.xpose.msra.mxu0 0.0
    %69 = vmatprep.subr.mxu0 0.0
    %70 = vmatpush1.xpose.msra.mxu0 0.0
    %71 = vmatprep.subr.mxu0 0.0
    %72 = vmatpush1.xpose.msra.mxu0 0.0
    %73 = vmatprep.subr.mxu0 0.0
    %74 = vmatpush1.xpose.msra.mxu0 0.0
    %75 = vmatprep.subr.mxu0 0.0
    %76 = vmatpush1.xpose.msra.mxu0 0.0
    %77 = vmatprep.subr.mxu0 0.0
    %78 = vmatpush1.xpose.msra.mxu0 0.0
    %79 = vmatprep.subr.mxu0 0.0
    %80 = vmatpush1.xpose.msra.mxu0 0.0
    %81 = vmatprep.subr.mxu0 0.0
    %82 = vmatpush1.xpose.msra.mxu0 0.0
    %83 = vmatprep.subr.mxu0 0.0
    %84 = vmatpush1.xpose.msra.mxu0 0.0
    %85 = vmatprep.subr.mxu0 0.0
    %86 = vmatpush1.xpose.msra.mxu0 0.0
    %87 = vmatprep.subr.mxu0 0.0
    %88 = vmatpush1.xpose.msra.mxu0 0.0
    %89 = vmatprep.subr.mxu0 0.0
    %90 = vmatpush1.xpose.msra.mxu0 0.0
    %91 = vmatprep.subr.mxu0 0.0
    %92 = vmatpush1.xpose.msra.mxu0 0.0
    %93 = vmatprep.subr.mxu0 0.0
    %94 = vmatpush1.xpose.msra.mxu0 0.0
    %95 = vmatprep.subr.mxu0 0.0
    %96 = vmatpush1.xpose.msra.mxu0 0.0
    %97 = vmatprep.subr.mxu0 0.0
    %98 = vmatpush1.xpose.msra.mxu0 0.0
    %99 = vmatprep.subr.mxu0 0.0
    %100 = vmatpush1.xpose.msra.mxu0 0.0
    %101 = vmatprep.subr.mxu0 0.0
    %102 = vmatpush1.xpose.msra.mxu0 0.0
    %103 = vmatprep.subr.mxu0 0.0
    %104 = vmatpush1.xpose.msra.mxu0 0.0
    %105 = vmatprep.subr.mxu0 0.0
    %106 = vmatpush1.xpose.msra.mxu0 0.0
    %107 = vmatprep.mubr.f32.mxu0 0.0
    %108 = vmatmul.mubr.f32.gmra.mrb[0].mxu0 %v29
    %v109 = vpop.f32.mrb[0].mxu0
    %v110 = vadd.f32 %v25, %v109
    %v111 = vpop.f32.mrb[0].mxu0
    %112 = vdwg.mxu0
    %v113 = vmax.f32 %v110, 0.0
    %vm114 = vcmask 261120
    %115 = vst.msk [vmem:[#allocation2] sm:$0xff] %vm114, %v113
    // Predicated region
    $region14: #{tpu_custom_call.1} parent=1 // pred_check
      _
    $region15: #{tpu_custom_call.1} parent=1 // pred_check_branch
      %117 = sbr.rel (0) target = $region17
    $region16: #{tpu_custom_call.1} parent=1 // pred_region
      %s119 = ssub.s32 128, 128
      %120 = vsyncadd [#allocation3], %s119
      %s122 = sshll.u32 [#allocation2], 4
      %s123 = int_to_ptr.vmem [resolvable:$true] %s122
      %125 = dma.vmem_to_hbm [thread:$0]  %s123, 128, %s3, [#allocation3]
    $region17: #{tpu_custom_call.1} parent=1 // pred_fallthru
      _
    // Predicated region
    $region18: #{tpu_custom_call.1} parent=1 // pred_check
      _
    $region19: #{tpu_custom_call.1} parent=1 // pred_check_branch
      %127 = sbr.rel (0) target = $region21
    $region20: #{tpu_custom_call.1} parent=1 // pred_region
      %128 = dma.done [#allocation3], 128
    $region21: #{tpu_custom_call.1} parent=1 // pred_fallthru
      _
    %129 = vsyncpa [#allocation3], 1

</llo_original>
